<compile_context>
chip_gen: v5e
topology: v5e:2x2
jax: 0.10.0
libtpu: 0.0.40
codegen_flags: <defaults>
</compile_context>

<pallas_src>
from typing import NamedTuple

import jax
import jax.numpy as jnp
from jax import lax
from jax.experimental import pallas as pl
from jax.experimental.pallas import tpu as pltpu

LANE = 128     # vreg lane width: last dim of every tile is a multiple of this
SUBLANE = 8    # vreg sublane height
_MIB = 1024 * 1024


def _round_up(n, m):
    return ((n + m - 1) // m) * m


def _vmem_capacity_bytes():
    """Per-core VMEM capacity (conservative 64 MiB fallback == v7x per-TC)."""
    try:
        info = pltpu.get_tpu_info()
        cap = int(getattr(info, "vmem_capacity_bytes", 64 * _MIB))
        return cap if cap > 0 else 64 * _MIB
    except Exception:
        return 64 * _MIB


def _choose_tile_b(B):
    """Batch tile: minimize padded rows, prefer >=2 grid steps, then bigger tiles."""
    Bs = _round_up(B, SUBLANE)
    if Bs <= 128:
        return Bs
    candidates = sorted({c for c in (128, 256, 512) if c <= Bs} | {min(Bs, 512)})

    def cost(c):
        Bp = _round_up(Bs, c)
        steps = Bp // c
        return (Bp - Bs, 0 if steps >= 2 else 1, -c)

    return min(candidates, key=cost)


def make_mlp_kernel(hidden_true, tile_b, chunk_rows, eps=1e-5):
    """Kernel for one batch tile: fc1 -> LayerNorm -> ReLU -> fc2, sub-chunked."""
    inv_h = 1.0 / float(hidden_true)

    if chunk_rows > 0 and tile_b % chunk_rows == 0 and tile_b // chunk_rows >= 2:
        n_chunks = tile_b // chunk_rows
    else:
        n_chunks = 1
    rows = tile_b // n_chunks

    def kernel(x_ref, w1_ref, b1_ref, g_ref, be_ref, w2_ref, b2_ref, o_ref):
        # Hoist small epilogue params out of the chunk loop (JAX does not CSE
        # broadcasts).
        b1 = b1_ref[...]
        g = g_ref[...]
        be = be_ref[...]
        b2 = b2_ref[...]

        def body(x_blk):
            # ---- fc1: bf16 operands, f32 MXU accumulation ----
            h = jnp.dot(x_blk.astype(jnp.bfloat16), w1_ref[...],
                        preferred_element_type=jnp.float32)
            h = h + b1                                   # f32 epilogue (VPU)

            # ---- LayerNorm over the TRUE hidden width (f32) ----
            # Padded hidden lanes of h are exactly 0 (zero-padded w1 cols / b1),
            # so both lane sums are correct without any mask.  The two sums are
            # independent XLU reductions (overlap-friendly).
            s1 = jnp.sum(h, axis=-1, keepdims=True)
            s2 = jnp.sum(h * h, axis=-1, keepdims=True)
            mean = s1 * inv_h
            var = jnp.maximum(s2 * inv_h - mean * mean, 0.0)
            hn = (h - mean) * lax.rsqrt(var + eps)
            # gamma/beta are zero-padded -> padded hidden lanes become exactly 0
            hn = hn * g + be

            # ---- ReLU (f32) ----
            hr = jnp.maximum(hn, 0.0)

            # ---- fc2: bf16 operands, f32 accumulation; lane-dense store ----
            out = jnp.dot(hr.astype(jnp.bfloat16), w2_ref[...],
                          preferred_element_type=jnp.float32)
            return out + b2

        if n_chunks == 1:
            o_ref[...] = body(x_ref[...])
        else:
            # Independent row chunks: lets the scheduler overlap chunk n+1's
            # MXU matmuls with chunk n's VPU/XLU LayerNorm/ReLU epilogue.
            for c in range(n_chunks):
                r0 = c * rows  # static offset
                o_ref[pl.ds(r0, rows), :] = body(x_ref[pl.ds(r0, rows), :])

    return kernel


class MLPPallasParams(NamedTuple):
    w1: jax.Array      # (Ip, Hp) bf16, zero padded
    b1: jax.Array      # (1, Hp)  f32, zero padded
    gamma: jax.Array   # (1, Hp)  f32, zero padded
    beta: jax.Array    # (1, Hp)  f32, zero padded
    w2: jax.Array      # (Hp, Op) bf16, zero padded
    b2: jax.Array      # (1, Op)  f32, zero padded
    input_size: int
    hidden_size: int
    output_size: int


def prepare_mlp_params(w1, b1, gamma, beta, w2, b2):
    """One-time pad + bf16 cast of the weights (hoisted out of the per-call path).

    Zero padding is load-bearing: padded w1 columns / b1 / gamma / beta entries
    must be zero so the padded hidden lanes of fc1's output are exactly 0.
    """
    I, H = w1.shape
    O = w2.shape[1]
    Ip, Hp, Op = _round_up(I, LANE), _round_up(H, LANE), _round_up(O, LANE)
    w1p = jnp.pad(w1.astype(jnp.bfloat16), ((0, Ip - I), (0, Hp - H)))
    w2p = jnp.pad(w2.astype(jnp.bfloat16), ((0, Hp - H), (0, Op - O)))
    b1p = jnp.pad(jnp.reshape(b1, (1, H)).astype(jnp.float32), ((0, 0), (0, Hp - H)))
    gp = jnp.pad(jnp.reshape(gamma, (1, H)).astype(jnp.float32), ((0, 0), (0, Hp - H)))
    bep = jnp.pad(jnp.reshape(beta, (1, H)).astype(jnp.float32), ((0, 0), (0, Hp - H)))
    b2p = jnp.pad(jnp.reshape(b2, (1, O)).astype(jnp.float32), ((0, 0), (0, Op - O)))
    return MLPPallasParams(w1p, b1p, gp, bep, w2p, b2p, I, H, O)


def mlp_forward(x, params: MLPPallasParams, *, eps=1e-5):
    """x:(B, input_size) f32 -> (B, output_size) f32."""
    B, I = x.shape
    assert I == params.input_size, "input feature dim mismatch"
    H, O = params.hidden_size, params.output_size
    Ip, Hp = params.w1.shape
    Op = params.w2.shape[1]

    tile_b = _choose_tile_b(B)
    Bp = _round_up(B, tile_b)

    # x stays f32 in HBM (cast to bf16 inside the kernel); pad only if needed.
    if Bp != B or Ip != I:
        xp = jnp.pad(x.astype(jnp.float32), ((0, Bp - B), (0, Ip - I)))
    else:
        xp = x.astype(jnp.float32)

    chunk_rows = 256 if tile_b >= 512 else 128
    kernel = make_mlp_kernel(H, tile_b, chunk_rows, eps)
    grid = (Bp // tile_b,)

    # ---- VMEM budget from actual buffer footprint (+15% headroom) ----
    eff_chunk = chunk_rows if (tile_b % chunk_rows == 0 and tile_b // chunk_rows >= 2) else tile_b
    bytes_x_tile = tile_b * Ip * 4                 # f32 x tile (double-buffered)
    bytes_out_tile = tile_b * Op * 4               # f32 out tile (double-buffered)
    bytes_resident = (Ip * Hp + Hp * Op) * 2 + (3 * Hp + Op) * 4   # bf16 W, f32 vecs
    bytes_interm = 2 * eff_chunk * Hp * 4          # f32 h / normalized h per chunk
    vmem_needed = int(1.15 * (2 * bytes_x_tile + 2 * bytes_out_tile
                              + bytes_resident + bytes_interm))
    vmem_cap = int(0.85 * _vmem_capacity_bytes())
    vmem_limit = max(min(max(vmem_needed, 32 * _MIB), vmem_cap), 4 * _MIB)

    flops = 2 * Bp * (Ip * Hp + Hp * Op)
    bytes_accessed = (xp.size * 4 + (Ip * Hp + Hp * Op) * 2
                      + (3 * Hp + Op) * 4 + Bp * Op * 4)

    def _build(single_buffer_resident):
        def res_spec(shape):
            if single_buffer_resident:
                return pl.BlockSpec(shape, lambda i: (0, 0),
                                    pipeline_mode=pl.Buffered(1))
            return pl.BlockSpec(shape, lambda i: (0, 0))

        return pl.pallas_call(
            kernel,
            out_shape=jax.ShapeDtypeStruct((Bp, Op), jnp.float32),
            grid_spec=pltpu.PrefetchScalarGridSpec(
                num_scalar_prefetch=0,
                grid=grid,
                in_specs=[
                    pl.BlockSpec((tile_b, Ip), lambda i: (i, 0)),  # x: streamed
                    res_spec((Ip, Hp)),                            # w1: resident
                    res_spec((1, Hp)),                             # b1
                    res_spec((1, Hp)),                             # gamma
                    res_spec((1, Hp)),                             # beta
                    res_spec((Hp, Op)),                            # w2: resident
                    res_spec((1, Op)),                             # b2
                ],
                out_specs=pl.BlockSpec((tile_b, Op), lambda i: (i, 0)),  # lane-dense
            ),
            compiler_params=pltpu.CompilerParams(
                dimension_semantics=("parallel",),   # batch axis megacore-shardable
                vmem_limit_bytes=vmem_limit,
            ),
            cost_estimate=pl.CostEstimate(flops=flops, transcendentals=Bp,
                                          bytes_accessed=bytes_accessed),
        )

    args = (xp, params.w1, params.b1, params.gamma, params.beta, params.w2, params.b2)
    try:
        out = _build(True)(*args)
    except Exception:
        # pl.Buffered(1) on resident operands is a pure VMEM-footprint
        # optimization; fall back to default double-buffering if unsupported.
        out = _build(False)(*args)

    return out[:B, :O]


def init_params(key, input_size, hidden_size, output_size):
    """Deterministic init mimicking torch.nn.Linear defaults (uniform +-1/sqrt(fan_in))."""
    k1, k2, k3, k4 = jax.random.split(key, 4)
    bound1 = 1.0 / (input_size ** 0.5)
    w1 = jax.random.uniform(k1, (input_size, hidden_size), jnp.float32, -bound1, bound1)
    b1 = jax.random.uniform(k2, (1, hidden_size), jnp.float32, -bound1, bound1)
    gamma = jnp.ones((1, hidden_size), jnp.float32)   # LayerNorm weight
    beta = jnp.zeros((1, hidden_size), jnp.float32)   # LayerNorm bias
    bound2 = 1.0 / (hidden_size ** 0.5)
    w2 = jax.random.uniform(k3, (hidden_size, output_size), jnp.float32, -bound2, bound2)
    b2 = jax.random.uniform(k4, (1, output_size), jnp.float32, -bound2, bound2)
    return w1, b1, gamma, beta, w2, b2


def _reference(x, w1, b1, gamma, beta, w2, b2, eps=1e-5):
    h = x @ w1 + b1
    mu = h.mean(-1, keepdims=True)
    var = ((h - mu) ** 2).mean(-1, keepdims=True)
    hn = (h - mu) / jnp.sqrt(var + eps) * gamma + beta
    return jnp.maximum(hn, 0.0) @ w2 + b2


if __name__ == "__main__":
    input_size, hidden_size, output_size = 32, 64, 16
    key = jax.random.PRNGKey(0)
    kx, kp = jax.random.split(key)

    raw = init_params(kp, input_size, hidden_size, output_size)
    params = prepare_mlp_params(*raw)   # one-time pad + bf16 cast (hoisted)

    # --- case 1: batch = 8 (sublane-aligned, single tile) ---
    x = jax.random.normal(kx, (8, input_size), jnp.float32)
    out = mlp_forward(x, params)
    jax.block_until_ready(out)
    ref = _reference(x, *raw)
    assert out.shape == (8, output_size)
    assert jnp.allclose(out, ref, atol=5e-2, rtol=5e-2)

    # --- case 2: batch = 10 (exercises batch-row padding / slicing) ---
    kx2, kx3 = jax.random.split(kx)
    x2 = jax.random.normal(kx2, (10, input_size), jnp.float32)
    out2 = mlp_forward(x2, params)
    jax.block_until_ready(out2)
    ref2 = _reference(x2, *raw)
    assert out2.shape == (10, output_size)
    assert jnp.allclose(out2, ref2, atol=5e-2, rtol=5e-2)

    # --- case 3: batch = 512 (multi-step grid + in-kernel sub-chunking) ---
    x3 = jax.random.normal(kx3, (512, input_size), jnp.float32)
    out3 = mlp_forward(x3, params)
    jax.block_until_ready(out3)
    ref3 = _reference(x3, *raw)
    assert out3.shape == (512, output_size)
    assert jnp.allclose(out3, ref3, atol=5e-2, rtol=5e-2)

    print("KERNEL_OK")
</pallas_src>

<mosaic_0001>
module attributes {stable_mosaic.version = 11 : i64} {
  func.func @kernel(%arg0: i32, %arg1: memref<8x128xf32, #tpu.memory_space<vmem>>, %arg2: memref<128x128xbf16, #tpu.memory_space<vmem>>, %arg3: memref<1x128xf32, #tpu.memory_space<vmem>>, %arg4: memref<1x128xf32, #tpu.memory_space<vmem>>, %arg5: memref<1x128xf32, #tpu.memory_space<vmem>>, %arg6: memref<128x128xbf16, #tpu.memory_space<vmem>>, %arg7: memref<1x128xf32, #tpu.memory_space<vmem>>, %arg8: memref<8x128xf32, #tpu.memory_space<vmem>>) attributes {dimension_semantics = [#tpu.dimension_semantics<parallel>], iteration_bounds = array<i64: 1>, scalar_prefetch = 0 : i64, scratch_operands = 0 : i64, tpu.core_type = #tpu.core_type<tc>, window_params = [{transform_indices = @transform_0, window_bounds = array<i64: 8, 128>}, {pipeline_mode = #tpu.pipeline_mode<synchronous>, transform_indices = @transform_1, window_bounds = array<i64: 128, 128>}, {pipeline_mode = #tpu.pipeline_mode<synchronous>, transform_indices = @transform_2, window_bounds = array<i64: 1, 128>}, {pipeline_mode = #tpu.pipeline_mode<synchronous>, transform_indices = @transform_3, window_bounds = array<i64: 1, 128>}, {pipeline_mode = #tpu.pipeline_mode<synchronous>, transform_indices = @transform_4, window_bounds = array<i64: 1, 128>}, {pipeline_mode = #tpu.pipeline_mode<synchronous>, transform_indices = @transform_5, window_bounds = array<i64: 128, 128>}, {pipeline_mode = #tpu.pipeline_mode<synchronous>, transform_indices = @transform_6, window_bounds = array<i64: 1, 128>}, {transform_indices = @transform_7, window_bounds = array<i64: 8, 128>}]} {
    %c0 = arith.constant 0 : index
    %c0_0 = arith.constant 0 : index
    %0 = vector.load %arg3[%c0, %c0_0] : memref<1x128xf32, #tpu.memory_space<vmem>>, vector<1x128xf32>
    %c0_1 = arith.constant 0 : index
    %c0_2 = arith.constant 0 : index
    %1 = vector.load %arg4[%c0_1, %c0_2] : memref<1x128xf32, #tpu.memory_space<vmem>>, vector<1x128xf32>
    %c0_3 = arith.constant 0 : index
    %c0_4 = arith.constant 0 : index
    %2 = vector.load %arg5[%c0_3, %c0_4] : memref<1x128xf32, #tpu.memory_space<vmem>>, vector<1x128xf32>
    %c0_5 = arith.constant 0 : index
    %c0_6 = arith.constant 0 : index
    %3 = vector.load %arg7[%c0_5, %c0_6] : memref<1x128xf32, #tpu.memory_space<vmem>>, vector<1x128xf32>
    %c0_7 = arith.constant 0 : index
    %c0_8 = arith.constant 0 : index
    %4 = vector.load %arg1[%c0_7, %c0_8] : memref<8x128xf32, #tpu.memory_space<vmem>>, vector<8x128xf32>
    %5 = arith.truncf %4 : vector<8x128xf32> to vector<8x128xbf16>
    %c0_9 = arith.constant 0 : index
    %c0_10 = arith.constant 0 : index
    %6 = vector.load %arg2[%c0_9, %c0_10] : memref<128x128xbf16, #tpu.memory_space<vmem>>, vector<128x128xbf16>
    %cst = arith.constant dense<0.000000e+00> : vector<8x128xf32>
    %7 = tpu.matmul %5, %6, %cst {dimension_numbers = #tpu.dot_dimension_numbers<[1], [0], [0], [1], [0, 0, 1, 1], [], []>} : vector<8x128xbf16>, vector<128x128xbf16>, vector<8x128xf32> -> vector<8x128xf32>
    %8 = vector.broadcast %0 : vector<1x128xf32> to vector<8x128xf32>
    %9 = arith.addf %7, %8 : vector<8x128xf32>
    %cst_11 = arith.constant dense<0.000000e+00> : vector<8xf32>
    %10 = vector.multi_reduction <add>, %9, %cst_11 [1] : vector<8x128xf32> to vector<8xf32>
    %11 = vector.shape_cast %10 : vector<8xf32> to vector<8x1xf32>
    %12 = arith.mulf %9, %9 : vector<8x128xf32>
    %cst_12 = arith.constant dense<0.000000e+00> : vector<8xf32>
    %13 = vector.multi_reduction <add>, %12, %cst_12 [1] : vector<8x128xf32> to vector<8xf32>
    %14 = vector.shape_cast %13 : vector<8xf32> to vector<8x1xf32>
    %cst_13 = arith.constant 1.562500e-02 : f32
    %15 = vector.broadcast %cst_13 : f32 to vector<8x1xf32>
    %16 = arith.mulf %11, %15 : vector<8x1xf32>
    %cst_14 = arith.constant 1.562500e-02 : f32
    %17 = vector.broadcast %cst_14 : f32 to vector<8x1xf32>
    %18 = arith.mulf %14, %17 : vector<8x1xf32>
    %19 = arith.mulf %16, %16 : vector<8x1xf32>
    %20 = arith.subf %18, %19 : vector<8x1xf32>
    %cst_15 = arith.constant 0.000000e+00 : f32
    %21 = vector.broadcast %cst_15 : f32 to vector<8x1xf32>
    %22 = arith.maximumf %20, %21 : vector<8x1xf32>
    %23 = vector.broadcast %16 : vector<8x1xf32> to vector<8x128xf32>
    %24 = arith.subf %9, %23 : vector<8x128xf32>
    %cst_16 = arith.constant 9.99999974E-6 : f32
    %25 = vector.broadcast %cst_16 : f32 to vector<8x1xf32>
    %26 = arith.addf %22, %25 : vector<8x1xf32>
    %27 = math.rsqrt %26 : vector<8x1xf32>
    %28 = vector.broadcast %27 : vector<8x1xf32> to vector<8x128xf32>
    %29 = arith.mulf %24, %28 : vector<8x128xf32>
    %30 = vector.broadcast %1 : vector<1x128xf32> to vector<8x128xf32>
    %31 = arith.mulf %29, %30 : vector<8x128xf32>
    %32 = vector.broadcast %2 : vector<1x128xf32> to vector<8x128xf32>
    %33 = arith.addf %31, %32 : vector<8x128xf32>
    %cst_17 = arith.constant 0.000000e+00 : f32
    %34 = vector.broadcast %cst_17 : f32 to vector<8x128xf32>
    %35 = arith.maximumf %33, %34 : vector<8x128xf32>
    %36 = arith.truncf %35 : vector<8x128xf32> to vector<8x128xbf16>
    %c0_18 = arith.constant 0 : index
    %c0_19 = arith.constant 0 : index
    %37 = vector.load %arg6[%c0_18, %c0_19] : memref<128x128xbf16, #tpu.memory_space<vmem>>, vector<128x128xbf16>
    %cst_20 = arith.constant dense<0.000000e+00> : vector<8x128xf32>
    %38 = tpu.matmul %36, %37, %cst_20 {dimension_numbers = #tpu.dot_dimension_numbers<[1], [0], [0], [1], [0, 0, 1, 1], [], []>} : vector<8x128xbf16>, vector<128x128xbf16>, vector<8x128xf32> -> vector<8x128xf32>
    %39 = vector.broadcast %3 : vector<1x128xf32> to vector<8x128xf32>
    %40 = arith.addf %38, %39 : vector<8x128xf32>
    %c0_21 = arith.constant 0 : index
    %c0_22 = arith.constant 0 : index
    %41 = vector.load %arg8[%c0_21, %c0_22] : memref<8x128xf32, #tpu.memory_space<vmem>>, vector<8x128xf32>
    tpu.vector_store %arg8[%c0_21, %c0_22], %40 {strides = array<i32>} : memref<8x128xf32, #tpu.memory_space<vmem>>, vector<8x128xf32>,
    return
  }
  func.func @transform_0(%arg0: i32) -> (i32, i32) {
    %c0_i32 = arith.constant 0 : i32
    %c0_i32_0 = arith.constant 0 : i32
    return %arg0, %c0_i32 : i32, i32
  }
  func.func @transform_1(%arg0: i32) -> (i32, i32) {
    %c0_i32 = arith.constant 0 : i32
    %c0_i32_0 = arith.constant 0 : i32
    %c0_i32_1 = arith.constant 0 : i32
    return %c0_i32, %c0_i32_0 : i32, i32
  }
  func.func @transform_2(%arg0: i32) -> (i32, i32) {
    %c0_i32 = arith.constant 0 : i32
    %c0_i32_0 = arith.constant 0 : i32
    %c0_i32_1 = arith.constant 0 : i32
    return %c0_i32, %c0_i32_0 : i32, i32
  }
  func.func @transform_3(%arg0: i32) -> (i32, i32) {
    %c0_i32 = arith.constant 0 : i32
    %c0_i32_0 = arith.constant 0 : i32
    %c0_i32_1 = arith.constant 0 : i32
    return %c0_i32, %c0_i32_0 : i32, i32
  }
  func.func @transform_4(%arg0: i32) -> (i32, i32) {
    %c0_i32 = arith.constant 0 : i32
    %c0_i32_0 = arith.constant 0 : i32
    %c0_i32_1 = arith.constant 0 : i32
    return %c0_i32, %c0_i32_0 : i32, i32
  }
  func.func @transform_5(%arg0: i32) -> (i32, i32) {
    %c0_i32 = arith.constant 0 : i32
    %c0_i32_0 = arith.constant 0 : i32
    %c0_i32_1 = arith.constant 0 : i32
    return %c0_i32, %c0_i32_0 : i32, i32
  }
  func.func @transform_6(%arg0: i32) -> (i32, i32) {
    %c0_i32 = arith.constant 0 : i32
    %c0_i32_0 = arith.constant 0 : i32
    %c0_i32_1 = arith.constant 0 : i32
    return %c0_i32, %c0_i32_0 : i32, i32
  }
  func.func @transform_7(%arg0: i32) -> (i32, i32) {
    %c0_i32 = arith.constant 0 : i32
    %c0_i32_0 = arith.constant 0 : i32
    return %arg0, %c0_i32 : i32, i32
  }
}

module attributes {stable_mosaic.version = 11 : i64} {
  func.func @kernel(%arg0: i32, %arg1: memref<8x128xf32, #tpu.memory_space<vmem>>, %arg2: memref<128x128xbf16, #tpu.memory_space<vmem>>, %arg3: memref<1x128xf32, #tpu.memory_space<vmem>>, %arg4: memref<1x128xf32, #tpu.memory_space<vmem>>, %arg5: memref<1x128xf32, #tpu.memory_space<vmem>>, %arg6: memref<128x128xbf16, #tpu.memory_space<vmem>>, %arg7: memref<1x128xf32, #tpu.memory_space<vmem>>, %arg8: memref<8x128xf32, #tpu.memory_space<vmem>>) attributes {dimension_semantics = [#tpu.dimension_semantics<parallel>], iteration_bounds = array<i64: 1>, scalar_prefetch = 0 : i64, scratch_operands = 0 : i64, tpu.core_type = #tpu.core_type<tc>, window_params = [{transform_indices = @transform_0, window_bounds = array<i64: 8, 128>}, {pipeline_mode = #tpu.pipeline_mode<synchronous>, transform_indices = @transform_1, window_bounds = array<i64: 128, 128>}, {pipeline_mode = #tpu.pipeline_mode<synchronous>, transform_indices = @transform_2, window_bounds = array<i64: 1, 128>}, {pipeline_mode = #tpu.pipeline_mode<synchronous>, transform_indices = @transform_3, window_bounds = array<i64: 1, 128>}, {pipeline_mode = #tpu.pipeline_mode<synchronous>, transform_indices = @transform_4, window_bounds = array<i64: 1, 128>}, {pipeline_mode = #tpu.pipeline_mode<synchronous>, transform_indices = @transform_5, window_bounds = array<i64: 128, 128>}, {pipeline_mode = #tpu.pipeline_mode<synchronous>, transform_indices = @transform_6, window_bounds = array<i64: 1, 128>}, {transform_indices = @transform_7, window_bounds = array<i64: 8, 128>}]} {
    %c0 = arith.constant 0 : index
    %c0_0 = arith.constant 0 : index
    %0 = vector.load %arg3[%c0, %c0_0] : memref<1x128xf32, #tpu.memory_space<vmem>>, vector<1x128xf32>
    %c0_1 = arith.constant 0 : index
    %c0_2 = arith.constant 0 : index
    %1 = vector.load %arg4[%c0_1, %c0_2] : memref<1x128xf32, #tpu.memory_space<vmem>>, vector<1x128xf32>
    %c0_3 = arith.constant 0 : index
    %c0_4 = arith.constant 0 : index
    %2 = vector.load %arg5[%c0_3, %c0_4] : memref<1x128xf32, #tpu.memory_space<vmem>>, vector<1x128xf32>
    %c0_5 = arith.constant 0 : index
    %c0_6 = arith.constant 0 : index
    %3 = vector.load %arg7[%c0_5, %c0_6] : memref<1x128xf32, #tpu.memory_space<vmem>>, vector<1x128xf32>
    %c0_7 = arith.constant 0 : index
    %c0_8 = arith.constant 0 : index
    %4 = vector.load %arg1[%c0_7, %c0_8] : memref<8x128xf32, #tpu.memory_space<vmem>>, vector<8x128xf32>
    %5 = arith.truncf %4 : vector<8x128xf32> to vector<8x128xbf16>
    %c0_9 = arith.constant 0 : index
    %c0_10 = arith.constant 0 : index
    %6 = vector.load %arg2[%c0_9, %c0_10] : memref<128x128xbf16, #tpu.memory_space<vmem>>, vector<128x128xbf16>
    %cst = arith.constant dense<0.000000e+00> : vector<8x128xf32>
    %7 = tpu.matmul %5, %6, %cst {dimension_numbers = #tpu.dot_dimension_numbers<[1], [0], [0], [1], [0, 0, 1, 1], [], []>} : vector<8x128xbf16>, vector<128x128xbf16>, vector<8x128xf32> -> vector<8x128xf32>
    %8 = vector.broadcast %0 : vector<1x128xf32> to vector<8x128xf32>
    %9 = arith.addf %7, %8 : vector<8x128xf32>
    %cst_11 = arith.constant dense<0.000000e+00> : vector<8xf32>
    %10 = vector.multi_reduction <add>, %9, %cst_11 [1] : vector<8x128xf32> to vector<8xf32>
    %11 = vector.shape_cast %10 : vector<8xf32> to vector<8x1xf32>
    %12 = arith.mulf %9, %9 : vector<8x128xf32>
    %cst_12 = arith.constant dense<0.000000e+00> : vector<8xf32>
    %13 = vector.multi_reduction <add>, %12, %cst_12 [1] : vector<8x128xf32> to vector<8xf32>
    %14 = vector.shape_cast %13 : vector<8xf32> to vector<8x1xf32>
    %cst_13 = arith.constant 1.562500e-02 : f32
    %15 = vector.broadcast %cst_13 : f32 to vector<8x1xf32>
    %16 = arith.mulf %11, %15 : vector<8x1xf32>
    %cst_14 = arith.constant 1.562500e-02 : f32
    %17 = vector.broadcast %cst_14 : f32 to vector<8x1xf32>
    %18 = arith.mulf %14, %17 : vector<8x1xf32>
    %19 = arith.mulf %16, %16 : vector<8x1xf32>
    %20 = arith.subf %18, %19 : vector<8x1xf32>
    %cst_15 = arith.constant 0.000000e+00 : f32
    %21 = vector.broadcast %cst_15 : f32 to vector<8x1xf32>
    %22 = arith.maximumf %20, %21 : vector<8x1xf32>
    %23 = vector.broadcast %16 : vector<8x1xf32> to vector<8x128xf32>
    %24 = arith.subf %9, %23 : vector<8x128xf32>
    %cst_16 = arith.constant 9.99999974E-6 : f32
    %25 = vector.broadcast %cst_16 : f32 to vector<8x1xf32>
    %26 = arith.addf %22, %25 : vector<8x1xf32>
    %27 = math.rsqrt %26 : vector<8x1xf32>
    %28 = vector.broadcast %27 : vector<8x1xf32> to vector<8x128xf32>
    %29 = arith.mulf %24, %28 : vector<8x128xf32>
    %30 = vector.broadcast %1 : vector<1x128xf32> to vector<8x128xf32>
    %31 = arith.mulf %29, %30 : vector<8x128xf32>
    %32 = vector.broadcast %2 : vector<1x128xf32> to vector<8x128xf32>
    %33 = arith.addf %31, %32 : vector<8x128xf32>
    %cst_17 = arith.constant 0.000000e+00 : f32
    %34 = vector.broadcast %cst_17 : f32 to vector<8x128xf32>
    %35 = arith.maximumf %33, %34 : vector<8x128xf32>
    %36 = arith.truncf %35 : vector<8x128xf32> to vector<8x128xbf16>
    %c0_18 = arith.constant 0 : index
    %c0_19 = arith.constant 0 : index
    %37 = vector.load %arg6[%c0_18, %c0_19] : memref<128x128xbf16, #tpu.memory_space<vmem>>, vector<128x128xbf16>
    %cst_20 = arith.constant dense<0.000000e+00> : vector<8x128xf32>
    %38 = tpu.matmul %36, %37, %cst_20 {dimension_numbers = #tpu.dot_dimension_numbers<[1], [0], [0], [1], [0, 0, 1, 1], [], []>} : vector<8x128xbf16>, vector<128x128xbf16>, vector<8x128xf32> -> vector<8x128xf32>
    %39 = vector.broadcast %3 : vector<1x128xf32> to vector<8x128xf32>
    %40 = arith.addf %38, %39 : vector<8x128xf32>
    %c0_21 = arith.constant 0 : index
    %c0_22 = arith.constant 0 : index
    %41 = vector.load %arg8[%c0_21, %c0_22] : memref<8x128xf32, #tpu.memory_space<vmem>>, vector<8x128xf32>
    tpu.vector_store %arg8[%c0_21, %c0_22], %40 {strides = array<i32>} : memref<8x128xf32, #tpu.memory_space<vmem>>, vector<8x128xf32>,
    return
  }
  func.func @transform_0(%arg0: i32) -> (i32, i32) {
    %c0_i32 = arith.constant 0 : i32
    %c0_i32_0 = arith.constant 0 : i32
    return %arg0, %c0_i32 : i32, i32
  }
  func.func @transform_1(%arg0: i32) -> (i32, i32) {
    %c0_i32 = arith.constant 0 : i32
    %c0_i32_0 = arith.constant 0 : i32
    %c0_i32_1 = arith.constant 0 : i32
    return %c0_i32, %c0_i32_0 : i32, i32
  }
  func.func @transform_2(%arg0: i32) -> (i32, i32) {
    %c0_i32 = arith.constant 0 : i32
    %c0_i32_0 = arith.constant 0 : i32
    %c0_i32_1 = arith.constant 0 : i32
    return %c0_i32, %c0_i32_0 : i32, i32
  }
  func.func @transform_3(%arg0: i32) -> (i32, i32) {
    %c0_i32 = arith.constant 0 : i32
    %c0_i32_0 = arith.constant 0 : i32
    %c0_i32_1 = arith.constant 0 : i32
    return %c0_i32, %c0_i32_0 : i32, i32
  }
  func.func @transform_4(%arg0: i32) -> (i32, i32) {
    %c0_i32 = arith.constant 0 : i32
    %c0_i32_0 = arith.constant 0 : i32
    %c0_i32_1 = arith.constant 0 : i32
    return %c0_i32, %c0_i32_0 : i32, i32
  }
  func.func @transform_5(%arg0: i32) -> (i32, i32) {
    %c0_i32 = arith.constant 0 : i32
    %c0_i32_0 = arith.constant 0 : i32
    %c0_i32_1 = arith.constant 0 : i32
    return %c0_i32, %c0_i32_0 : i32, i32
  }
  func.func @transform_6(%arg0: i32) -> (i32, i32) {
    %c0_i32 = arith.constant 0 : i32
    %c0_i32_0 = arith.constant 0 : i32
    %c0_i32_1 = arith.constant 0 : i32
    return %c0_i32, %c0_i32_0 : i32, i32
  }
  func.func @transform_7(%arg0: i32) -> (i32, i32) {
    %c0_i32 = arith.constant 0 : i32
    %c0_i32_0 = arith.constant 0 : i32
    return %arg0, %c0_i32 : i32, i32
  }
}

</mosaic_0001>

<llo_original>
// kernel: tpu_custom_call.1
$region0: #{tpu_custom_call.1}
  #allocation0 [shape = 'u32[]', space=smem, size = 0x4, offset = 0x4, fixed_abs, tag = 'smem constant byte address 0x4 - core index']
  #allocation1 [shape = 'u32[72,128]{1,0:T(1,128)}', space=vmem, size = 0x9000, scoped, tag = 'internal scratch']
  %s0 = inlined_call_operand.hbm [shape: f32[8,128], index: 0, kind: input, shape index: {}]
  %s1 = inlined_call_operand.hbm [shape: bf16[128,128], index: 1, kind: input, shape index: {}]
  %s2 = inlined_call_operand.vmem [shape: f32[1,128], index: 2, kind: input, shape index: {}]
  %s3 = inlined_call_operand.vmem [shape: f32[1,128], index: 3, kind: input, shape index: {}]
  %s4 = inlined_call_operand.vmem [shape: f32[1,128], index: 4, kind: input, shape index: {}]
  %s5 = inlined_call_operand.hbm [shape: bf16[128,128], index: 5, kind: input, shape index: {}]
  %s6 = inlined_call_operand.vmem [shape: f32[1,128], index: 6, kind: input, shape index: {}]
  %s7 = inlined_call_operand.hbm [shape: f32[8,128], index: 7, kind: output, shape index: {}]
  %s8 = sld [smem:[#allocation0]]
  $region50: #{tpu_custom_call.1} parent=0
    _
  %s10 = ssub.s32 1, %s8
  %s11 = scalar_select 0, %s10, %s8
  $region1: #{tpu_custom_call.1} parent=0
    #allocation2 [shape = 'u8[4096]{0}', space=vmem, size = 0x1000, scoped, tag = 'input window, operand 0, single buffered']
    #allocation3 [shape = 's32[1]{0}', space=sflag, size = 0x4, scoped, tag = 'scoped memory for tpu_custom_call.1']
    #allocation4 [shape = 's32[1]{0}', space=sflag, size = 0x4, scoped, tag = 'scoped memory for tpu_custom_call.1']
    #allocation5 [shape = 'u8[32768]{0}', space=vmem, size = 0x8000, scoped, tag = 'input window, operand 1, single buffered']
    #allocation6 [shape = 's32[1]{0}', space=sflag, size = 0x4, scoped, tag = 'scoped memory for tpu_custom_call.1']
    #allocation7 [shape = 'u8[32768]{0}', space=vmem, size = 0x8000, scoped, tag = 'input window, operand 5, single buffered']
    #allocation8 [shape = 'u8[4096]{0}', space=vmem, size = 0x1000, scoped, tag = 'output window, operand 0, single buffered']
    %12 = vsyncpa [#allocation3], 0
    %13 = vsyncpa [#allocation6], 0
    %14 = vsyncpa [#allocation4], 0
    // Predicated region
    $region2: #{tpu_custom_call.1} parent=1 // pred_check
      _
    $region3: #{tpu_custom_call.1} parent=1 // pred_check_branch
      %16 = sbr.rel (0) target = $region5
    $region4: #{tpu_custom_call.1} parent=1 // pred_region
      %18 = vsyncadd [#allocation3], 0
      %s20 = sshll.u32 %s0, 4
      %s21 = int_to_ptr.hbm [resolvable:$true] %s20
      %s22 = sshll.u32 [#allocation2], 4
      %s23 = int_to_ptr.vmem [resolvable:$true] %s22
      %25 = dma.hbm_to_vmem [thread:$0]  %s21, 128, %s23, [#allocation3]
    $region5: #{tpu_custom_call.1} parent=1 // pred_fallthru
      _
    // Predicated region
    $region6: #{tpu_custom_call.1} parent=1 // pred_check
      _
    $region7: #{tpu_custom_call.1} parent=1 // pred_check_branch
      %27 = sbr.rel (0) target = $region9
    $region8: #{tpu_custom_call.1} parent=1 // pred_region
      %29 = vsyncadd [#allocation6], 0
      %s30 = sshll.u32 %s1, 4
      %s31 = int_to_ptr.hbm [resolvable:$true] %s30
      %s32 = sshll.u32 [#allocation5], 4
      %s33 = int_to_ptr.vmem [resolvable:$true] %s32
      %38 = dma.hbm_to_vmem [thread:$0]  %s31, 1024, %s33, [#allocation6], 64, 64, 4
    $region9: #{tpu_custom_call.1} parent=1 // pred_fallthru
      _
    // Predicated region
    $region10: #{tpu_custom_call.1} parent=1 // pred_check
      _
    $region11: #{tpu_custom_call.1} parent=1 // pred_check_branch
      %40 = sbr.rel (0) target = $region13
    $region12: #{tpu_custom_call.1} parent=1 // pred_region
      _
    $region13: #{tpu_custom_call.1} parent=1 // pred_fallthru
      _
    // Predicated region
    $region14: #{tpu_custom_call.1} parent=1 // pred_check
      _
    $region15: #{tpu_custom_call.1} parent=1 // pred_check_branch
      %42 = sbr.rel (0) target = $region17
    $region16: #{tpu_custom_call.1} parent=1 // pred_region
      _
    $region17: #{tpu_custom_call.1} parent=1 // pred_fallthru
      _
    // Predicated region
    $region18: #{tpu_custom_call.1} parent=1 // pred_check
      _
    $region19: #{tpu_custom_call.1} parent=1 // pred_check_branch
      %44 = sbr.rel (0) target = $region21
    $region20: #{tpu_custom_call.1} parent=1 // pred_region
      _
    $region21: #{tpu_custom_call.1} parent=1 // pred_fallthru
      _
    // Predicated region
    $region22: #{tpu_custom_call.1} parent=1 // pred_check
      _
    $region23: #{tpu_custom_call.1} parent=1 // pred_check_branch
      %46 = sbr.rel (0) target = $region25
    $region24: #{tpu_custom_call.1} parent=1 // pred_region
      %48 = vsyncadd [#allocation6], 0
      %s49 = sshll.u32 %s5, 4
      %s50 = int_to_ptr.hbm [resolvable:$true] %s49
      %s51 = sshll.u32 [#allocation7], 4
      %s52 = int_to_ptr.vmem [resolvable:$true] %s51
      %57 = dma.hbm_to_vmem [thread:$0]  %s50, 1024, %s52, [#allocation6], 64, 64, 4
    $region25: #{tpu_custom_call.1} parent=1 // pred_fallthru
      _
    // Predicated region
    $region26: #{tpu_custom_call.1} parent=1 // pred_check
      _
    $region27: #{tpu_custom_call.1} parent=1 // pred_check_branch
      %59 = sbr.rel (0) target = $region29
    $region28: #{tpu_custom_call.1} parent=1 // pred_region
      _
    $region29: #{tpu_custom_call.1} parent=1 // pred_fallthru
      _
    // Predicated region
    $region30: #{tpu_custom_call.1} parent=1 // pred_check
      _
    $region31: #{tpu_custom_call.1} parent=1 // pred_check_branch
      %61 = sbr.rel (0) target = $region33
    $region32: #{tpu_custom_call.1} parent=1 // pred_region
      %63 = dma.done [#allocation3], 128
    $region33: #{tpu_custom_call.1} parent=1 // pred_fallthru
      _
    // Predicated region
    $region34: #{tpu_custom_call.1} parent=1 // pred_check
      _
    $region35: #{tpu_custom_call.1} parent=1 // pred_check_branch
      %65 = sbr.rel (0) target = $region37
    $region36: #{tpu_custom_call.1} parent=1 // pred_region
      %67 = dma.done [#allocation6], 1024
    $region37: #{tpu_custom_call.1} parent=1 // pred_fallthru
      _
    // Predicated region
    $region38: #{tpu_custom_call.1} parent=1 // pred_check
      _
    $region39: #{tpu_custom_call.1} parent=1 // pred_check_branch
      %69 = sbr.rel (0) target = $region41
    $region40: #{tpu_custom_call.1} parent=1 // pred_region
      %71 = dma.done [#allocation6], 1024
    $region41: #{tpu_custom_call.1} parent=1 // pred_fallthru
      _
    %v72 = vld [vmem:[%s2] sm:$0x1]
    %v73 = vld [vmem:[%s3] sm:$0x1]
    %v74 = vld [vmem:[%s4] sm:$0x1]
    %v75 = vld [vmem:[%s6] sm:$0x1]
    %v76 = vld [vmem:[#allocation2] sm:$0xff]
    %v77 = vpack.c.bf16 %v76, %v76
    %v78 = vld [vmem:[#allocation5] sm:$0xf]
    %v79 = vld [vmem:[#allocation5 + $0x4] sm:$0xf]
    %v80 = vld [vmem:[#allocation5 + $0x8] sm:$0xf]
    %v81 = vld [vmem:[#allocation5 + $0xc] sm:$0xf]
    %v82 = vld [vmem:[#allocation5 + $0x10] sm:$0xf]
    %v83 = vld [vmem:[#allocation5 + $0x14] sm:$0xf]
    %v84 = vld [vmem:[#allocation5 + $0x18] sm:$0xf]
    %v85 = vld [vmem:[#allocation5 + $0x1c] sm:$0xf]
    %v86 = vld [vmem:[#allocation5 + $0x20] sm:$0xf]
    %v87 = vld [vmem:[#allocation5 + $0x24] sm:$0xf]
    %v88 = vld [vmem:[#allocation5 + $0x28] sm:$0xf]
    %v89 = vld [vmem:[#allocation5 + $0x2c] sm:$0xf]
    %v90 = vld [vmem:[#allocation5 + $0x30] sm:$0xf]
    %v91 = vld [vmem:[#allocation5 + $0x34] sm:$0xf]
    %v92 = vld [vmem:[#allocation5 + $0x38] sm:$0xf]
    %v93 = vld [vmem:[#allocation5 + $0x3c] sm:$0xf]
    %v95 = vperm.slane %v72, 0
    %v113 = vunpack.c.l.b16 %v78
    %v114 = vunpack.c.l.b16 %v79
    %v115 = vunpack.c.l.b16 %v80
    %v116 = vunpack.c.l.b16 %v81
    %v117 = vunpack.c.l.b16 %v82
    %v118 = vunpack.c.l.b16 %v83
    %v119 = vunpack.c.l.b16 %v84
    %v120 = vunpack.c.l.b16 %v85
    %v121 = vunpack.c.l.b16 %v86
    %v122 = vunpack.c.l.b16 %v87
    %v123 = vunpack.c.l.b16 %v88
    %v124 = vunpack.c.l.b16 %v89
    %v125 = vunpack.c.l.b16 %v90
    %v126 = vunpack.c.l.b16 %v91
    %v127 = vunpack.c.l.b16 %v92
    %v128 = vunpack.c.l.b16 %v93
    %v129 = vpack.c.b16 %v114, %v113
    %v130 = vpack.c.b16 %v116, %v115
    %v131 = vpack.c.b16 %v118, %v117
    %v132 = vpack.c.b16 %v120, %v119
    %v133 = vpack.c.b16 %v122, %v121
    %v134 = vpack.c.b16 %v124, %v123
    %v135 = vpack.c.b16 %v126, %v125
    %v136 = vpack.c.b16 %v128, %v127
    %145 = vmatpush.bf16.msra.mxu0 %v136
    %146 = vmatpush.bf16.msra.mxu0 %v135
    %147 = vmatpush.bf16.msra.mxu0 %v134
    %148 = vmatpush.bf16.msra.mxu0 %v133
    %149 = vmatpush.bf16.msra.mxu0 %v132
    %150 = vmatpush.bf16.msra.mxu0 %v131
    %151 = vmatpush.bf16.msra.mxu0 %v130
    %152 = vmatpush.bf16.msra.mxu0 %v129
    %153 = vmatmul.bf16.gmra.mxu0 %v77
    %v154 = vpop.f32.mrf.mxu0
    %v155 = vadd.f32 %v95, %v154
    %v156 = vpop.f32.mrf.mxu0
    %157 = vdwg.mxu0
    %158 = vadd.xlane.f32.xlu0 %v155
    %v159 = vpop.xlane.xlu0 %158
    %v160 = vmul.f32 %v155, %v155
    %161 = vadd.xlane.f32.xlu0 %v160
    %v162 = vpop.xlane.xlu0 %161
    %v163 = vmul.f32 %v159, 0.015625
    %v164 = vmul.f32 %v162, 0.015625
    %v165 = vmul.f32 %v163, %v163
    %v166 = vsub.f32 %v164, %v165
    %v167 = vmax.f32 %v166, 0.0
    %v168 = vsub.f32 %v155, %v163
    %v169 = vadd.f32 %v167, 1e-05
    %v170 = vrsqrt.pop %v169
    %v171 = vmul.f32 %v170, %v169
    %v172 = vmul.f32 %v171, %v170
    %v173 = vmul.f32 0.5, %v172
    %v174 = vsub.f32 1.5, %v173
    %v175 = vmul.f32 %v170, %v174
    %vm176 = vweird.f32 %v169
    %vm177 = vweird.f32 %v170
    %vm178 = vmor %vm176, %vm177
    %v179 = vsel %vm178, %v170, %v175
    %v180 = vmul.f32 %v168, %v179
    %v182 = vperm.slane %v73, 0
    %v184 = vmul.f32 %v180, %v182
    %v186 = vperm.slane %v74, 0
    %v188 = vadd.f32 %v184, %v186
    %v189 = vmax.f32 %v188, 0.0
    %v190 = vpack.c.bf16 %v189, %v189
    %v191 = vld [vmem:[#allocation7] sm:$0xf]
    %v192 = vld [vmem:[#allocation7 + $0x4] sm:$0xf]
    %v193 = vld [vmem:[#allocation7 + $0x8] sm:$0xf]
    %v194 = vld [vmem:[#allocation7 + $0xc] sm:$0xf]
    %v195 = vld [vmem:[#allocation7 + $0x10] sm:$0xf]
    %v196 = vld [vmem:[#allocation7 + $0x14] sm:$0xf]
    %v197 = vld [vmem:[#allocation7 + $0x18] sm:$0xf]
    %v198 = vld [vmem:[#allocation7 + $0x1c] sm:$0xf]
    %v199 = vld [vmem:[#allocation7 + $0x20] sm:$0xf]
    %v200 = vld [vmem:[#allocation7 + $0x24] sm:$0xf]
    %v201 = vld [vmem:[#allocation7 + $0x28] sm:$0xf]
    %v202 = vld [vmem:[#allocation7 + $0x2c] sm:$0xf]
    %v203 = vld [vmem:[#allocation7 + $0x30] sm:$0xf]
    %v204 = vld [vmem:[#allocation7 + $0x34] sm:$0xf]
    %v205 = vld [vmem:[#allocation7 + $0x38] sm:$0xf]
    %v206 = vld [vmem:[#allocation7 + $0x3c] sm:$0xf]
    %v208 = vperm.slane %v75, 0
    %v226 = vunpack.c.l.b16 %v191
    %v227 = vunpack.c.l.b16 %v192
    %v228 = vunpack.c.l.b16 %v193
    %v229 = vunpack.c.l.b16 %v194
    %v230 = vunpack.c.l.b16 %v195
    %v231 = vunpack.c.l.b16 %v196
    %v232 = vunpack.c.l.b16 %v197
    %v233 = vunpack.c.l.b16 %v198
    %v234 = vunpack.c.l.b16 %v199
    %v235 = vunpack.c.l.b16 %v200
    %v236 = vunpack.c.l.b16 %v201
    %v237 = vunpack.c.l.b16 %v202
    %v238 = vunpack.c.l.b16 %v203
    %v239 = vunpack.c.l.b16 %v204
    %v240 = vunpack.c.l.b16 %v205
    %v241 = vunpack.c.l.b16 %v206
    %v242 = vpack.c.b16 %v227, %v226
    %v243 = vpack.c.b16 %v229, %v228
    %v244 = vpack.c.b16 %v231, %v230
    %v245 = vpack.c.b16 %v233, %v232
    %v246 = vpack.c.b16 %v235, %v234
    %v247 = vpack.c.b16 %v237, %v236
    %v248 = vpack.c.b16 %v239, %v238
    %v249 = vpack.c.b16 %v241, %v240
    %258 = vmatpush.bf16.msra.mxu0 %v249
    %259 = vmatpush.bf16.msra.mxu0 %v248
    %260 = vmatpush.bf16.msra.mxu0 %v247
    %261 = vmatpush.bf16.msra.mxu0 %v246
    %262 = vmatpush.bf16.msra.mxu0 %v245
    %263 = vmatpush.bf16.msra.mxu0 %v244
    %264 = vmatpush.bf16.msra.mxu0 %v243
    %265 = vmatpush.bf16.msra.mxu0 %v242
    %266 = vmatmul.bf16.gmra.mxu0 %v190
    %v267 = vpop.f32.mrf.mxu0
    %v268 = vadd.f32 %v208, %v267
    %v269 = vpop.f32.mrf.mxu0
    %270 = vdwg.mxu0
    %271 = vst [vmem:[#allocation8] sm:$0xff] %v268
    // Predicated region
    $region42: #{tpu_custom_call.1} parent=1 // pred_check
      _
    $region43: #{tpu_custom_call.1} parent=1 // pred_check_branch
      %273 = sbr.rel (0) target = $region45
    $region44: #{tpu_custom_call.1} parent=1 // pred_region
      %275 = vsyncadd [#allocation4], 0
      %s277 = sshll.u32 [#allocation8], 4
      %s278 = int_to_ptr.vmem [resolvable:$true] %s277
      %s279 = sshll.u32 %s7, 4
      %s280 = int_to_ptr.hbm [resolvable:$true] %s279
      %282 = dma.vmem_to_hbm [thread:$0]  %s278, 128, %s280, [#allocation4]
    $region45: #{tpu_custom_call.1} parent=1 // pred_fallthru
      _
    // Predicated region
    $region46: #{tpu_custom_call.1} parent=1 // pred_check
      _
    $region47: #{tpu_custom_call.1} parent=1 // pred_check_branch
      %284 = sbr.rel (0) target = $region49
    $region48: #{tpu_custom_call.1} parent=1 // pred_region
      %286 = dma.done [#allocation4], 128
    $region49: #{tpu_custom_call.1} parent=1 // pred_fallthru
      _
    %287 = vsyncpa [#allocation3], 1
    %288 = vsyncpa [#allocation6], 1
    %289 = vsyncpa [#allocation4], 1

// kernel: tpu_custom_call.1
$region0: #{tpu_custom_call.1}
  #allocation0 [shape = 'u32[]', space=smem, size = 0x4, offset = 0x4, fixed_abs, tag = 'smem constant byte address 0x4 - core index']
  #allocation1 [shape = 'u32[72,128]{1,0:T(1,128)}', space=vmem, size = 0x9000, scoped, tag = 'internal scratch']
  %s0 = inlined_call_operand.hbm [shape: f32[8,128], index: 0, kind: input, shape index: {}]
  %s1 = inlined_call_operand.hbm [shape: bf16[128,128], index: 1, kind: input, shape index: {}]
  %s2 = inlined_call_operand.vmem [shape: f32[1,128], index: 2, kind: input, shape index: {}]
  %s3 = inlined_call_operand.vmem [shape: f32[1,128], index: 3, kind: input, shape index: {}]
  %s4 = inlined_call_operand.vmem [shape: f32[1,128], index: 4, kind: input, shape index: {}]
  %s5 = inlined_call_operand.hbm [shape: bf16[128,128], index: 5, kind: input, shape index: {}]
  %s6 = inlined_call_operand.vmem [shape: f32[1,128], index: 6, kind: input, shape index: {}]
  %s7 = inlined_call_operand.hbm [shape: f32[8,128], index: 7, kind: output, shape index: {}]
  %s8 = sld [smem:[#allocation0]]
  $region50: #{tpu_custom_call.1} parent=0
    _
  %s10 = ssub.s32 1, %s8
  %s11 = scalar_select 0, %s10, %s8
  $region1: #{tpu_custom_call.1} parent=0
    #allocation2 [shape = 'u8[4096]{0}', space=vmem, size = 0x1000, scoped, tag = 'input window, operand 0, single buffered']
    #allocation3 [shape = 's32[1]{0}', space=sflag, size = 0x4, scoped, tag = 'scoped memory for tpu_custom_call.1']
    #allocation4 [shape = 's32[1]{0}', space=sflag, size = 0x4, scoped, tag = 'scoped memory for tpu_custom_call.1']
    #allocation5 [shape = 'u8[32768]{0}', space=vmem, size = 0x8000, scoped, tag = 'input window, operand 1, single buffered']
    #allocation6 [shape = 's32[1]{0}', space=sflag, size = 0x4, scoped, tag = 'scoped memory for tpu_custom_call.1']
    #allocation7 [shape = 'u8[32768]{0}', space=vmem, size = 0x8000, scoped, tag = 'input window, operand 5, single buffered']
    #allocation8 [shape = 'u8[4096]{0}', space=vmem, size = 0x1000, scoped, tag = 'output window, operand 0, single buffered']
    %12 = vsyncpa [#allocation3], 0
    %13 = vsyncpa [#allocation6], 0
    %14 = vsyncpa [#allocation4], 0
    // Predicated region
    $region2: #{tpu_custom_call.1} parent=1 // pred_check
      _
    $region3: #{tpu_custom_call.1} parent=1 // pred_check_branch
      %16 = sbr.rel (0) target = $region5
    $region4: #{tpu_custom_call.1} parent=1 // pred_region
      %18 = vsyncadd [#allocation3], 0
      %s20 = sshll.u32 %s0, 4
      %s21 = int_to_ptr.hbm [resolvable:$true] %s20
      %s22 = sshll.u32 [#allocation2], 4
      %s23 = int_to_ptr.vmem [resolvable:$true] %s22
      %25 = dma.hbm_to_vmem [thread:$0]  %s21, 128, %s23, [#allocation3]
    $region5: #{tpu_custom_call.1} parent=1 // pred_fallthru
      _
    // Predicated region
    $region6: #{tpu_custom_call.1} parent=1 // pred_check
      _
    $region7: #{tpu_custom_call.1} parent=1 // pred_check_branch
      %27 = sbr.rel (0) target = $region9
    $region8: #{tpu_custom_call.1} parent=1 // pred_region
      %29 = vsyncadd [#allocation6], 0
      %s30 = sshll.u32 %s1, 4
      %s31 = int_to_ptr.hbm [resolvable:$true] %s30
      %s32 = sshll.u32 [#allocation5], 4
      %s33 = int_to_ptr.vmem [resolvable:$true] %s32
      %38 = dma.hbm_to_vmem [thread:$0]  %s31, 1024, %s33, [#allocation6], 64, 64, 4
    $region9: #{tpu_custom_call.1} parent=1 // pred_fallthru
      _
    // Predicated region
    $region10: #{tpu_custom_call.1} parent=1 // pred_check
      _
    $region11: #{tpu_custom_call.1} parent=1 // pred_check_branch
      %40 = sbr.rel (0) target = $region13
    $region12: #{tpu_custom_call.1} parent=1 // pred_region
      _
    $region13: #{tpu_custom_call.1} parent=1 // pred_fallthru
      _
    // Predicated region
    $region14: #{tpu_custom_call.1} parent=1 // pred_check
      _
    $region15: #{tpu_custom_call.1} parent=1 // pred_check_branch
      %42 = sbr.rel (0) target = $region17
    $region16: #{tpu_custom_call.1} parent=1 // pred_region
      _
    $region17: #{tpu_custom_call.1} parent=1 // pred_fallthru
      _
    // Predicated region
    $region18: #{tpu_custom_call.1} parent=1 // pred_check
      _
    $region19: #{tpu_custom_call.1} parent=1 // pred_check_branch
      %44 = sbr.rel (0) target = $region21
    $region20: #{tpu_custom_call.1} parent=1 // pred_region
      _
    $region21: #{tpu_custom_call.1} parent=1 // pred_fallthru
      _
    // Predicated region
    $region22: #{tpu_custom_call.1} parent=1 // pred_check
      _
    $region23: #{tpu_custom_call.1} parent=1 // pred_check_branch
      %46 = sbr.rel (0) target = $region25
    $region24: #{tpu_custom_call.1} parent=1 // pred_region
      %48 = vsyncadd [#allocation6], 0
      %s49 = sshll.u32 %s5, 4
      %s50 = int_to_ptr.hbm [resolvable:$true] %s49
      %s51 = sshll.u32 [#allocation7], 4
      %s52 = int_to_ptr.vmem [resolvable:$true] %s51
      %57 = dma.hbm_to_vmem [thread:$0]  %s50, 1024, %s52, [#allocation6], 64, 64, 4
    $region25: #{tpu_custom_call.1} parent=1 // pred_fallthru
      _
    // Predicated region
    $region26: #{tpu_custom_call.1} parent=1 // pred_check
      _
    $region27: #{tpu_custom_call.1} parent=1 // pred_check_branch
      %59 = sbr.rel (0) target = $region29
    $region28: #{tpu_custom_call.1} parent=1 // pred_region
      _
    $region29: #{tpu_custom_call.1} parent=1 // pred_fallthru
      _
    // Predicated region
    $region30: #{tpu_custom_call.1} parent=1 // pred_check
      _
    $region31: #{tpu_custom_call.1} parent=1 // pred_check_branch
      %61 = sbr.rel (0) target = $region33
    $region32: #{tpu_custom_call.1} parent=1 // pred_region
      %63 = dma.done [#allocation3], 128
    $region33: #{tpu_custom_call.1} parent=1 // pred_fallthru
      _
    // Predicated region
    $region34: #{tpu_custom_call.1} parent=1 // pred_check
      _
    $region35: #{tpu_custom_call.1} parent=1 // pred_check_branch
      %65 = sbr.rel (0) target = $region37
    $region36: #{tpu_custom_call.1} parent=1 // pred_region
      %67 = dma.done [#allocation6], 1024
    $region37: #{tpu_custom_call.1} parent=1 // pred_fallthru
      _
    // Predicated region
    $region38: #{tpu_custom_call.1} parent=1 // pred_check
      _
    $region39: #{tpu_custom_call.1} parent=1 // pred_check_branch
      %69 = sbr.rel (0) target = $region41
    $region40: #{tpu_custom_call.1} parent=1 // pred_region
      %71 = dma.done [#allocation6], 1024
    $region41: #{tpu_custom_call.1} parent=1 // pred_fallthru
      _
    %v72 = vld [vmem:[%s2] sm:$0x1]
    %v73 = vld [vmem:[%s3] sm:$0x1]
    %v74 = vld [vmem:[%s4] sm:$0x1]
    %v75 = vld [vmem:[%s6] sm:$0x1]
    %v76 = vld [vmem:[#allocation2] sm:$0xff]
    %v77 = vpack.c.bf16 %v76, %v76
    %v78 = vld [vmem:[#allocation5] sm:$0xf]
    %v79 = vld [vmem:[#allocation5 + $0x4] sm:$0xf]
    %v80 = vld [vmem:[#allocation5 + $0x8] sm:$0xf]
    %v81 = vld [vmem:[#allocation5 + $0xc] sm:$0xf]
    %v82 = vld [vmem:[#allocation5 + $0x10] sm:$0xf]
    %v83 = vld [vmem:[#allocation5 + $0x14] sm:$0xf]
    %v84 = vld [vmem:[#allocation5 + $0x18] sm:$0xf]
    %v85 = vld [vmem:[#allocation5 + $0x1c] sm:$0xf]
    %v86 = vld [vmem:[#allocation5 + $0x20] sm:$0xf]
    %v87 = vld [vmem:[#allocation5 + $0x24] sm:$0xf]
    %v88 = vld [vmem:[#allocation5 + $0x28] sm:$0xf]
    %v89 = vld [vmem:[#allocation5 + $0x2c] sm:$0xf]
    %v90 = vld [vmem:[#allocation5 + $0x30] sm:$0xf]
    %v91 = vld [vmem:[#allocation5 + $0x34] sm:$0xf]
    %v92 = vld [vmem:[#allocation5 + $0x38] sm:$0xf]
    %v93 = vld [vmem:[#allocation5 + $0x3c] sm:$0xf]
    %v95 = vperm.slane %v72, 0
    %v113 = vunpack.c.l.b16 %v78
    %v114 = vunpack.c.l.b16 %v79
    %v115 = vunpack.c.l.b16 %v80
    %v116 = vunpack.c.l.b16 %v81
    %v117 = vunpack.c.l.b16 %v82
    %v118 = vunpack.c.l.b16 %v83
    %v119 = vunpack.c.l.b16 %v84
    %v120 = vunpack.c.l.b16 %v85
    %v121 = vunpack.c.l.b16 %v86
    %v122 = vunpack.c.l.b16 %v87
    %v123 = vunpack.c.l.b16 %v88
    %v124 = vunpack.c.l.b16 %v89
    %v125 = vunpack.c.l.b16 %v90
    %v126 = vunpack.c.l.b16 %v91
    %v127 = vunpack.c.l.b16 %v92
    %v128 = vunpack.c.l.b16 %v93
    %v129 = vpack.c.b16 %v114, %v113
    %v130 = vpack.c.b16 %v116, %v115
    %v131 = vpack.c.b16 %v118, %v117
    %v132 = vpack.c.b16 %v120, %v119
    %v133 = vpack.c.b16 %v122, %v121
    %v134 = vpack.c.b16 %v124, %v123
    %v135 = vpack.c.b16 %v126, %v125
    %v136 = vpack.c.b16 %v128, %v127
    %145 = vmatpush.bf16.msra.mxu0 %v136
    %146 = vmatpush.bf16.msra.mxu0 %v135
    %147 = vmatpush.bf16.msra.mxu0 %v134
    %148 = vmatpush.bf16.msra.mxu0 %v133
    %149 = vmatpush.bf16.msra.mxu0 %v132
    %150 = vmatpush.bf16.msra.mxu0 %v131
    %151 = vmatpush.bf16.msra.mxu0 %v130
    %152 = vmatpush.bf16.msra.mxu0 %v129
    %153 = vmatmul.bf16.gmra.mxu0 %v77
    %v154 = vpop.f32.mrf.mxu0
    %v155 = vadd.f32 %v95, %v154
    %v156 = vpop.f32.mrf.mxu0
    %157 = vdwg.mxu0
    %158 = vadd.xlane.f32.xlu0 %v155
    %v159 = vpop.xlane.xlu0 %158
    %v160 = vmul.f32 %v155, %v155
    %161 = vadd.xlane.f32.xlu0 %v160
    %v162 = vpop.xlane.xlu0 %161
    %v163 = vmul.f32 %v159, 0.015625
    %v164 = vmul.f32 %v162, 0.015625
    %v165 = vmul.f32 %v163, %v163
    %v166 = vsub.f32 %v164, %v165
    %v167 = vmax.f32 %v166, 0.0
    %v168 = vsub.f32 %v155, %v163
    %v169 = vadd.f32 %v167, 1e-05
    %v170 = vrsqrt.pop %v169
    %v171 = vmul.f32 %v170, %v169
    %v172 = vmul.f32 %v171, %v170
    %v173 = vmul.f32 0.5, %v172
    %v174 = vsub.f32 1.5, %v173
    %v175 = vmul.f32 %v170, %v174
    %vm176 = vweird.f32 %v169
    %vm177 = vweird.f32 %v170
    %vm178 = vmor %vm176, %vm177
    %v179 = vsel %vm178, %v170, %v175
    %v180 = vmul.f32 %v168, %v179
    %v182 = vperm.slane %v73, 0
    %v184 = vmul.f32 %v180, %v182
    %v186 = vperm.slane %v74, 0
    %v188 = vadd.f32 %v184, %v186
    %v189 = vmax.f32 %v188, 0.0
    %v190 = vpack.c.bf16 %v189, %v189
    %v191 = vld [vmem:[#allocation7] sm:$0xf]
    %v192 = vld [vmem:[#allocation7 + $0x4] sm:$0xf]
    %v193 = vld [vmem:[#allocation7 + $0x8] sm:$0xf]
    %v194 = vld [vmem:[#allocation7 + $0xc] sm:$0xf]
    %v195 = vld [vmem:[#allocation7 + $0x10] sm:$0xf]
    %v196 = vld [vmem:[#allocation7 + $0x14] sm:$0xf]
    %v197 = vld [vmem:[#allocation7 + $0x18] sm:$0xf]
    %v198 = vld [vmem:[#allocation7 + $0x1c] sm:$0xf]
    %v199 = vld [vmem:[#allocation7 + $0x20] sm:$0xf]
    %v200 = vld [vmem:[#allocation7 + $0x24] sm:$0xf]
    %v201 = vld [vmem:[#allocation7 + $0x28] sm:$0xf]
    %v202 = vld [vmem:[#allocation7 + $0x2c] sm:$0xf]
    %v203 = vld [vmem:[#allocation7 + $0x30] sm:$0xf]
    %v204 = vld [vmem:[#allocation7 + $0x34] sm:$0xf]
    %v205 = vld [vmem:[#allocation7 + $0x38] sm:$0xf]
    %v206 = vld [vmem:[#allocation7 + $0x3c] sm:$0xf]
    %v208 = vperm.slane %v75, 0
    %v226 = vunpack.c.l.b16 %v191
    %v227 = vunpack.c.l.b16 %v192
    %v228 = vunpack.c.l.b16 %v193
    %v229 = vunpack.c.l.b16 %v194
    %v230 = vunpack.c.l.b16 %v195
    %v231 = vunpack.c.l.b16 %v196
    %v232 = vunpack.c.l.b16 %v197
    %v233 = vunpack.c.l.b16 %v198
    %v234 = vunpack.c.l.b16 %v199
    %v235 = vunpack.c.l.b16 %v200
    %v236 = vunpack.c.l.b16 %v201
    %v237 = vunpack.c.l.b16 %v202
    %v238 = vunpack.c.l.b16 %v203
    %v239 = vunpack.c.l.b16 %v204
    %v240 = vunpack.c.l.b16 %v205
    %v241 = vunpack.c.l.b16 %v206
    %v242 = vpack.c.b16 %v227, %v226
    %v243 = vpack.c.b16 %v229, %v228
    %v244 = vpack.c.b16 %v231, %v230
    %v245 = vpack.c.b16 %v233, %v232
    %v246 = vpack.c.b16 %v235, %v234
    %v247 = vpack.c.b16 %v237, %v236
    %v248 = vpack.c.b16 %v239, %v238
    %v249 = vpack.c.b16 %v241, %v240
    %258 = vmatpush.bf16.msra.mxu0 %v249
    %259 = vmatpush.bf16.msra.mxu0 %v248
    %260 = vmatpush.bf16.msra.mxu0 %v247
    %261 = vmatpush.bf16.msra.mxu0 %v246
    %262 = vmatpush.bf16.msra.mxu0 %v245
    %263 = vmatpush.bf16.msra.mxu0 %v244
    %264 = vmatpush.bf16.msra.mxu0 %v243
    %265 = vmatpush.bf16.msra.mxu0 %v242
    %266 = vmatmul.bf16.gmra.mxu0 %v190
    %v267 = vpop.f32.mrf.mxu0
    %v268 = vadd.f32 %v208, %v267
    %v269 = vpop.f32.mrf.mxu0
    %270 = vdwg.mxu0
    %271 = vst [vmem:[#allocation8] sm:$0xff] %v268
    // Predicated region
    $region42: #{tpu_custom_call.1} parent=1 // pred_check
      _
    $region43: #{tpu_custom_call.1} parent=1 // pred_check_branch
      %273 = sbr.rel (0) target = $region45
    $region44: #{tpu_custom_call.1} parent=1 // pred_region
      %275 = vsyncadd [#allocation4], 0
      %s277 = sshll.u32 [#allocation8], 4
      %s278 = int_to_ptr.vmem [resolvable:$true] %s277
      %s279 = sshll.u32 %s7, 4
      %s280 = int_to_ptr.hbm [resolvable:$true] %s279
      %282 = dma.vmem_to_hbm [thread:$0]  %s278, 128, %s280, [#allocation4]
    $region45: #{tpu_custom_call.1} parent=1 // pred_fallthru
      _
    // Predicated region
    $region46: #{tpu_custom_call.1} parent=1 // pred_check
      _
    $region47: #{tpu_custom_call.1} parent=1 // pred_check_branch
      %284 = sbr.rel (0) target = $region49
    $region48: #{tpu_custom_call.1} parent=1 // pred_region
      %286 = dma.done [#allocation4], 128
    $region49: #{tpu_custom_call.1} parent=1 // pred_fallthru
      _
    %287 = vsyncpa [#allocation3], 1
    %288 = vsyncpa [#allocation6], 1
    %289 = vsyncpa [#allocation4], 1

</llo_original>
